<compile_context>
chip_gen: v6e
topology: v6e:2x2x1
jax: 0.10.0
libtpu: 0.0.40
codegen_flags: <defaults>
</compile_context>

<pallas_src>
import functools

import jax
import jax.numpy as jnp
from jax.experimental import pallas as pl
from jax.experimental.pallas import tpu as pltpu

_VMEM_LIMIT = 32 * 1024 * 1024  # safe on v5e/v6e/v7x scoped-VMEM limits


def _pick_tile(dim, candidates):
    """Largest candidate that evenly divides `dim`; else the full dim."""
    for c in candidates:
        if dim % c == 0:
            return c
    return dim


def _round_up(x, m):
    return ((x + m - 1) // m) * m


# ----------------------------- fused matmul kernel -----------------------------
# y = [LN(x)] @ W + b  [-> GELU]  [+ residual]
# Grid: (M // tm, N // tn); K kept whole per block (needed for the LN prologue;
# K <= hidden size, so an (tm, K) block stays small).

def _fused_matmul_kernel(*refs, ln, residual, activation, eps):
    idx = 0
    x_ref = refs[idx]; idx += 1
    w_ref = refs[idx]; idx += 1
    b_ref = refs[idx]; idx += 1
    if ln:
        g_ref = refs[idx]; idx += 1
        be_ref = refs[idx]; idx += 1
    if residual:
        r_ref = refs[idx]; idx += 1
    o_ref = refs[idx]

    x = x_ref[...].astype(jnp.float32)
    if ln:
        mu = jnp.mean(x, axis=-1, keepdims=True)
        xc = x - mu
        var = jnp.mean(xc * xc, axis=-1, keepdims=True)
        x = xc * jax.lax.rsqrt(var + eps)
        x = x * g_ref[...].astype(jnp.float32) + be_ref[...].astype(jnp.float32)

    # bf16 MXU operands, f32 accumulation.
    acc = jnp.dot(x.astype(jnp.bfloat16), w_ref[...].astype(jnp.bfloat16),
                  preferred_element_type=jnp.float32)
    acc = acc + b_ref[...].astype(jnp.float32)
    if activation == "gelu":
        acc = jax.nn.gelu(acc, approximate=False)   # exact erf GELU (torch default)
    if residual:
        acc = acc + r_ref[...].astype(jnp.float32)
    o_ref[...] = acc.astype(o_ref.dtype)


def fused_matmul(x, w, b, *, gamma=None, beta=None, residual=None,
                 activation=None, eps=1e-6):
    M, K = x.shape
    K2, N = w.shape
    assert K == K2
    tm = _pick_tile(M, (256, 128, 64, 32, 16, 8))
    tn = _pick_tile(N, (512, 256, 128))
    grid = (M // tm, N // tn)

    in_specs = [
        pl.BlockSpec((tm, K), lambda i, j: (i, 0)),
        pl.BlockSpec((K, tn), lambda i, j: (0, j)),
        pl.BlockSpec((1, tn), lambda i, j: (0, j)),
    ]
    args = [x, w, b.reshape(1, N)]
    if gamma is not None:
        in_specs += [pl.BlockSpec((1, K), lambda i, j: (0, 0)),
                     pl.BlockSpec((1, K), lambda i, j: (0, 0))]
        args += [gamma.reshape(1, K), beta.reshape(1, K)]
    if residual is not None:
        in_specs.append(pl.BlockSpec((tm, tn), lambda i, j: (i, j)))
        args.append(residual)

    kernel = functools.partial(
        _fused_matmul_kernel, ln=gamma is not None,
        residual=residual is not None, activation=activation, eps=eps)

    return pl.pallas_call(
        kernel,
        out_shape=jax.ShapeDtypeStruct((M, N), x.dtype),
        grid=grid,
        in_specs=in_specs,
        out_specs=pl.BlockSpec((tm, tn), lambda i, j: (i, j)),
        compiler_params=pltpu.CompilerParams(
            dimension_semantics=("parallel", "parallel"),
            vmem_limit_bytes=_VMEM_LIMIT),
    )(*args)


# ----------------------------- standalone LayerNorm -----------------------------
# Only used for the final norm (block-internal LNs are fused into matmuls).

def _layernorm_kernel(x_ref, g_ref, b_ref, o_ref, *, eps):
    x = x_ref[...].astype(jnp.float32)
    mu = jnp.mean(x, axis=-1, keepdims=True)
    xc = x - mu
    var = jnp.mean(xc * xc, axis=-1, keepdims=True)
    y = xc * jax.lax.rsqrt(var + eps)
    y = y * g_ref[...].astype(jnp.float32) + b_ref[...].astype(jnp.float32)
    o_ref[...] = y.astype(o_ref.dtype)


def layer_norm(x, gamma, beta, eps=1e-6):
    M, D = x.shape
    tm = _pick_tile(M, (1024, 512, 256, 128, 64, 32, 16, 8))
    return pl.pallas_call(
        functools.partial(_layernorm_kernel, eps=eps),
        out_shape=jax.ShapeDtypeStruct((M, D), x.dtype),
        grid=(M // tm,),
        in_specs=[
            pl.BlockSpec((tm, D), lambda i: (i, 0)),
            pl.BlockSpec((1, D), lambda i: (0, 0)),
            pl.BlockSpec((1, D), lambda i: (0, 0)),
        ],
        out_specs=pl.BlockSpec((tm, D), lambda i: (i, 0)),
        compiler_params=pltpu.CompilerParams(
            dimension_semantics=("parallel",),
            vmem_limit_bytes=_VMEM_LIMIT),
    )(x, gamma.reshape(1, D), beta.reshape(1, D))


# ----------------------------- attention kernel -----------------------------
# One batch element per grid step; all heads handled inside the kernel from the
# packed (S, 3D) qkv block, single lane-dense (S, D) output store.

def _attn_kernel(qkv_ref, o_ref, *, num_heads, head_dim, scale, seq_valid):
    qkv = qkv_ref[0].astype(jnp.float32)          # (S_pad, 3D)
    S = qkv.shape[0]
    D = num_heads * head_dim
    # mask padded key positions
    key_valid = jax.lax.broadcasted_iota(jnp.int32, (S, S), 1) < seq_valid

    outs = []
    for h in range(num_heads):
        q = qkv[:, h * head_dim:(h + 1) * head_dim]
        k = qkv[:, D + h * head_dim: D + (h + 1) * head_dim]
        v = qkv[:, 2 * D + h * head_dim: 2 * D + (h + 1) * head_dim]
        s = jnp.dot(q.astype(jnp.bfloat16), k.astype(jnp.bfloat16).T,
                    preferred_element_type=jnp.float32) * scale       # (S, S)
        s = jnp.where(key_valid, s, -1e30)
        s = s - jnp.max(s, axis=-1, keepdims=True)
        p = jnp.exp(s)
        denom = jnp.sum(p, axis=-1, keepdims=True)
        p = p * pl.reciprocal(denom, approx=True)                     # EUP divide
        o = jnp.dot(p.astype(jnp.bfloat16), v.astype(jnp.bfloat16),
                    preferred_element_type=jnp.float32)               # (S, dh)
        outs.append(o)

    o_ref[0] = jnp.concatenate(outs, axis=-1).astype(o_ref.dtype)     # (S, D)


def attention(qkv, *, num_heads, head_dim, scale, seq_valid):
    B, S, threeD = qkv.shape
    D = num_heads * head_dim
    assert threeD == 3 * D
    return pl.pallas_call(
        functools.partial(_attn_kernel, num_heads=num_heads,
                          head_dim=head_dim, scale=scale, seq_valid=seq_valid),
        out_shape=jax.ShapeDtypeStruct((B, S, D), qkv.dtype),
        grid=(B,),
        in_specs=[pl.BlockSpec((1, S, threeD), lambda b: (b, 0, 0))],
        out_specs=pl.BlockSpec((1, S, D), lambda b: (b, 0, 0)),
        compiler_params=pltpu.CompilerParams(
            dimension_semantics=("parallel",),
            vmem_limit_bytes=_VMEM_LIMIT),
    )(qkv)


# --------------------------- ViT forward_features ---------------------------

def init_vit_params(key, *, in_chans, img_size, patch, embed_dim, depth,
                    num_heads, mlp_ratio):
    num_patches = (img_size // patch) ** 2
    seq_len = num_patches + 1
    hidden = int(embed_dim * mlp_ratio)
    keys = jax.random.split(key, 4 + depth)

    def normal(k, shape, std=0.02):
        return (std * jax.random.normal(k, shape)).astype(jnp.float32)

    params = {
        # conv weight (D, C, p, p) flattened to (C*p*p, D) matmul weight
        "patch_w": normal(keys[0], (in_chans * patch * patch, embed_dim)),
        "patch_b": jnp.zeros((embed_dim,), jnp.float32),
        "cls_token": normal(keys[1], (1, 1, embed_dim)),
        "pos_embed": normal(keys[2], (1, seq_len, embed_dim)),
        "norm_g": jnp.ones((embed_dim,), jnp.float32),
        "norm_b": jnp.zeros((embed_dim,), jnp.float32),
        "blocks": [],
    }
    for d in range(depth):
        bk = jax.random.split(keys[4 + d], 4)
        params["blocks"].append({
            "ln1_g": jnp.ones((embed_dim,), jnp.float32),
            "ln1_b": jnp.zeros((embed_dim,), jnp.float32),
            "qkv_w": normal(bk[0], (embed_dim, 3 * embed_dim)),
            "qkv_b": jnp.zeros((3 * embed_dim,), jnp.float32),
            "proj_w": normal(bk[1], (embed_dim, embed_dim)),
            "proj_b": jnp.zeros((embed_dim,), jnp.float32),
            "ln2_g": jnp.ones((embed_dim,), jnp.float32),
            "ln2_b": jnp.zeros((embed_dim,), jnp.float32),
            "fc1_w": normal(bk[2], (embed_dim, hidden)),
            "fc1_b": jnp.zeros((hidden,), jnp.float32),
            "fc2_w": normal(bk[3], (hidden, embed_dim)),
            "fc2_b": jnp.zeros((embed_dim,), jnp.float32),
        })
    return params


def vit_forward_features(x, params, *, patch, num_heads):
    """Equivalent of ViTFeatureExtractor.forward == vit.forward_features(x).

    x: (B, C, H, W) NCHW float32. Returns (B, num_patches + 1, D)."""
    B, C, H, W = x.shape
    D = params["cls_token"].shape[-1]
    p = patch
    nh, nw = H // p, W // p

    # --- patch embedding (Conv2d(C, D, p, stride=p) as a matmul) ---
    # TODO(synk): im2col is still an XLA reshape/transpose; could be folded into
    # the patch-embed kernel via an (nh, nw) index_map for large images.
    patches = (
        x.reshape(B, C, nh, p, nw, p)
         .transpose(0, 2, 4, 1, 3, 5)          # (B, nh, nw, C, p, p)
         .reshape(B * nh * nw, C * p * p)
    )
    tok = fused_matmul(patches, params["patch_w"], params["patch_b"])
    tok = tok.reshape(B, nh * nw, D)

    cls = jnp.broadcast_to(params["cls_token"], (B, 1, D))
    xt = jnp.concatenate([cls, tok], axis=1) + params["pos_embed"]   # (B, S, D)
    S = xt.shape[1]

    # pad token count to a sublane-friendly multiple of 8; padded keys are
    # masked inside attention, padded rows sliced off at the end.
    S_pad = _round_up(S, 8)
    if S_pad != S:
        xt = jnp.pad(xt, ((0, 0), (0, S_pad - S), (0, 0)))

    dh = D // num_heads
    scale = float(dh) ** -0.5

    xt2 = xt.reshape(B * S_pad, D)
    for blk in params["blocks"]:
        # ---- MHSA (pre-norm): LN fused into qkv matmul, residual into proj ----
        qkv = fused_matmul(xt2, blk["qkv_w"], blk["qkv_b"],
                           gamma=blk["ln1_g"], beta=blk["ln1_b"])     # (B*Sp, 3D)
        qkv = qkv.reshape(B, S_pad, 3 * D)
        o = attention(qkv, num_heads=num_heads, head_dim=dh,
                      scale=scale, seq_valid=S)                        # (B, Sp, D)
        o = o.reshape(B * S_pad, D)
        xt2 = fused_matmul(o, blk["proj_w"], blk["proj_b"], residual=xt2)

        # ---- MLP (pre-norm): LN+GELU fused into fc1, residual into fc2 ----
        h = fused_matmul(xt2, blk["fc1_w"], blk["fc1_b"],
                         gamma=blk["ln2_g"], beta=blk["ln2_b"],
                         activation="gelu")
        xt2 = fused_matmul(h, blk["fc2_w"], blk["fc2_b"], residual=xt2)

    # final norm; forward_features returns the full token sequence
    out = layer_norm(xt2, params["norm_g"], params["norm_b"])
    out = out.reshape(B, S_pad, D)[:, :S, :]
    return out


# ---------------------------------- main ----------------------------------

if __name__ == "__main__":
    B, C, IMG, PATCH = 2, 3, 16, 4
    EMBED_DIM, DEPTH, HEADS, MLP_RATIO = 32, 2, 4, 4.0

    root = jax.random.PRNGKey(0)
    k_param, k_input = jax.random.split(root)

    params = init_vit_params(
        k_param, in_chans=C, img_size=IMG, patch=PATCH, embed_dim=EMBED_DIM,
        depth=DEPTH, num_heads=HEADS, mlp_ratio=MLP_RATIO)

    x = jax.random.normal(k_input, (B, C, IMG, IMG), dtype=jnp.float32)

    feats = vit_forward_features(x, params, patch=PATCH, num_heads=HEADS)
    feats = jax.block_until_ready(feats)

    expected_seq = (IMG // PATCH) ** 2 + 1
    assert feats.shape == (B, expected_seq, EMBED_DIM), feats.shape
    assert feats.dtype == jnp.float32
    assert bool(jnp.all(jnp.isfinite(feats)))
    print("KERNEL_OK")
</pallas_src>

<mosaic_0001>
module attributes {stable_mosaic.version = 11 : i64} {
  func.func @_fused_matmul_kernel(%arg0: i32, %arg1: i32, %arg2: memref<32x48xf32, #tpu.memory_space<vmem>>, %arg3: memref<48x32xf32, #tpu.memory_space<vmem>>, %arg4: memref<1x32xf32, #tpu.memory_space<vmem>>, %arg5: memref<32x32xf32, #tpu.memory_space<vmem>>) attributes {dimension_semantics = [#tpu.dimension_semantics<parallel>, #tpu.dimension_semantics<parallel>], iteration_bounds = array<i64: 1, 1>, scalar_prefetch = 0 : i64, scratch_operands = 0 : i64, tpu.core_type = #tpu.core_type<tc>, window_params = [{transform_indices = @transform_0, window_bounds = array<i64: 32, 48>}, {transform_indices = @transform_1, window_bounds = array<i64: 48, 32>}, {transform_indices = @transform_2, window_bounds = array<i64: 1, 32>}, {transform_indices = @transform_3, window_bounds = array<i64: 32, 32>}]} {
    %c0 = arith.constant 0 : index
    %c0_0 = arith.constant 0 : index
    %0 = vector.load %arg2[%c0, %c0_0] : memref<32x48xf32, #tpu.memory_space<vmem>>, vector<32x48xf32>
    %1 = arith.truncf %0 : vector<32x48xf32> to vector<32x48xbf16>
    %c0_1 = arith.constant 0 : index
    %c0_2 = arith.constant 0 : index
    %2 = vector.load %arg3[%c0_1, %c0_2] : memref<48x32xf32, #tpu.memory_space<vmem>>, vector<48x32xf32>
    %3 = arith.truncf %2 : vector<48x32xf32> to vector<48x32xbf16>
    %cst = arith.constant dense<0.000000e+00> : vector<32x32xf32>
    %4 = tpu.matmul %1, %3, %cst {dimension_numbers = #tpu.dot_dimension_numbers<[1], [0], [0], [1], [0, 0, 1, 1], [], []>} : vector<32x48xbf16>, vector<48x32xbf16>, vector<32x32xf32> -> vector<32x32xf32>
    %c0_3 = arith.constant 0 : index
    %c0_4 = arith.constant 0 : index
    %5 = vector.load %arg4[%c0_3, %c0_4] : memref<1x32xf32, #tpu.memory_space<vmem>>, vector<1x32xf32>
    %6 = vector.broadcast %5 : vector<1x32xf32> to vector<32x32xf32>
    %7 = arith.addf %4, %6 : vector<32x32xf32>
    %c0_5 = arith.constant 0 : index
    %c0_6 = arith.constant 0 : index
    %8 = vector.load %arg5[%c0_5, %c0_6] : memref<32x32xf32, #tpu.memory_space<vmem>>, vector<32x32xf32>
    tpu.vector_store %arg5[%c0_5, %c0_6], %7 {strides = array<i32>} : memref<32x32xf32, #tpu.memory_space<vmem>>, vector<32x32xf32>,
    return
  }
  func.func @transform_0(%arg0: i32, %arg1: i32) -> (i32, i32) {
    %c0_i32 = arith.constant 0 : i32
    %c0_i32_0 = arith.constant 0 : i32
    return %arg0, %c0_i32 : i32, i32
  }
  func.func @transform_1(%arg0: i32, %arg1: i32) -> (i32, i32) {
    %c0_i32 = arith.constant 0 : i32
    %c0_i32_0 = arith.constant 0 : i32
    return %c0_i32, %arg1 : i32, i32
  }
  func.func @transform_2(%arg0: i32, %arg1: i32) -> (i32, i32) {
    %c0_i32 = arith.constant 0 : i32
    %c0_i32_0 = arith.constant 0 : i32
    return %c0_i32, %arg1 : i32, i32
  }
  func.func @transform_3(%arg0: i32, %arg1: i32) -> (i32, i32) {
    %c0_i32 = arith.constant 0 : i32
    return %arg0, %arg1 : i32, i32
  }
}

</mosaic_0001>

<llo_original>
// kernel: tpu_custom_call.1
$region0: #{tpu_custom_call.1}
  #allocation0 [shape = 'u32[]', space=smem, size = 0x4, offset = 0x4, fixed_abs, tag = 'smem constant byte address 0x4 - core index']
  #allocation1 [shape = 'u32[144,128]{1,0:T(1,128)}', space=vmem, size = 0x12000, scoped, tag = 'internal scratch']
  %s0 = inlined_call_operand.vmem [shape: f32[32,48], index: 0, kind: input, shape index: {}]
  %s1 = inlined_call_operand.vmem [shape: f32[48,32], index: 1, kind: input, shape index: {}]
  %s2 = inlined_call_operand.vmem [shape: f32[1,32], index: 2, kind: input, shape index: {}]
  %s3 = inlined_call_operand.hbm [shape: f32[32,32], index: 3, kind: output, shape index: {}]
  %s4 = sld [smem:[#allocation0]]
  $region22: #{tpu_custom_call.1} parent=0
    _
  %s6 = ssub.s32 1, %s4
  %s7 = scalar_select 0, %s6, %s4
  $region1: #{tpu_custom_call.1} parent=0
    #allocation2 [shape = 'u8[16384]{0}', space=vmem, size = 0x4000, scoped, tag = 'output window, operand 0, single buffered']
    #allocation3 [shape = 's32[1]{0}', space=sflag, size = 0x4, scoped, tag = 'scoped memory for tpu_custom_call.1']
    %8 = vsyncpa [#allocation3], 0
    // Predicated region
    $region2: #{tpu_custom_call.1} parent=1 // pred_check
      _
    $region3: #{tpu_custom_call.1} parent=1 // pred_check_branch
      %10 = sbr.rel (0) target = $region5
    $region4: #{tpu_custom_call.1} parent=1 // pred_region
      _
    $region5: #{tpu_custom_call.1} parent=1 // pred_fallthru
      _
    // Predicated region
    $region6: #{tpu_custom_call.1} parent=1 // pred_check
      _
    $region7: #{tpu_custom_call.1} parent=1 // pred_check_branch
      %12 = sbr.rel (0) target = $region9
    $region8: #{tpu_custom_call.1} parent=1 // pred_region
      _
    $region9: #{tpu_custom_call.1} parent=1 // pred_fallthru
      _
    // Predicated region
    $region10: #{tpu_custom_call.1} parent=1 // pred_check
      _
    $region11: #{tpu_custom_call.1} parent=1 // pred_check_branch
      %14 = sbr.rel (0) target = $region13
    $region12: #{tpu_custom_call.1} parent=1 // pred_region
      _
    $region13: #{tpu_custom_call.1} parent=1 // pred_fallthru
      _
    %v16 = vld [vmem:[%s0] sm:$0xff]
    %v17 = vld [vmem:[%s0 + $0x8] sm:$0xff]
    %v18 = vld [vmem:[%s0 + $0x10] sm:$0xff]
    %v19 = vld [vmem:[%s0 + $0x18] sm:$0xff]
    %v20 = vpack.c.bf16 %v17, %v16
    %v21 = vpack.c.bf16 %v19, %v18
    %v22 = vld [vmem:[%s1] sm:$0xff]
    %v23 = vld [vmem:[%s1 + $0x8] sm:$0xff]
    %v24 = vld [vmem:[%s1 + $0x10] sm:$0xff]
    %v25 = vld [vmem:[%s1 + $0x18] sm:$0xff]
    %v26 = vld [vmem:[%s1 + $0x20] sm:$0xff]
    %v27 = vld [vmem:[%s1 + $0x28] sm:$0xff]
    %v28 = vpack.c.bf16 %v23, %v22
    %v29 = vpack.c.bf16 %v25, %v24
    %v30 = vpack.c.bf16 %v27, %v26
    %v31 = vld [vmem:[%s2] sm:$0x1]
    %v33 = vlaneseq
    %v34 = vshrl.u32 %v33, 7
    %v35 = vsub.s32 0, %v34
    %v36 = vrot.slane %v31, %v35
    %vm38 = vcmask 392192
    %v40 = vsel %vm38, %v20, 0
    %v43 = vsel %vm38, %v21, 0
    %45 = vmatprep.subr.bf16.mxu0 0
    %46 = vmatpush1.bf16.msra.mxu0 0
    %47 = vmatprep.subr.bf16.mxu0 0
    %48 = vmatpush1.bf16.msra.mxu0 0
    %49 = vmatprep.subr.bf16.mxu0 0
    %50 = vmatpush1.bf16.msra.mxu0 0
    %51 = vmatprep.subr.bf16.mxu0 0
    %52 = vmatpush1.bf16.msra.mxu0 0
    %53 = vmatprep.subr.bf16.mxu0 0
    %54 = vmatpush1.bf16.msra.mxu0 0
    %55 = vmatprep.subr.bf16.mxu0 0
    %56 = vmatpush1.bf16.msra.mxu0 %v30
    %57 = vmatprep.subr.bf16.mxu0 0
    %58 = vmatpush1.bf16.msra.mxu0 %v29
    %59 = vmatprep.subr.bf16.mxu0 0
    %60 = vmatpush1.bf16.msra.mxu0 %v28
    %61 = vmatprep.subr.bf16.mxu0 0
    %62 = vmatpush2.bf16.msra.mxu0 0
    %63 = vmatprep.subr.bf16.mxu0 0
    %64 = vmatpush2.bf16.msra.mxu0 0
    %65 = vmatprep.subr.bf16.mxu0 0
    %66 = vmatpush2.bf16.msra.mxu0 0
    %67 = vmatprep.subr.bf16.mxu0 0
    %68 = vmatpush2.bf16.msra.mxu0 0
    %69 = vmatprep.subr.bf16.mxu0 0
    %70 = vmatpush2.bf16.msra.mxu0 0
    %71 = vmatprep.subr.bf16.mxu0 0
    %72 = vmatpush2.bf16.msra.mxu0 0
    %73 = vmatprep.subr.bf16.mxu0 0
    %74 = vmatpush2.bf16.msra.mxu0 0
    %75 = vmatprep.subr.bf16.mxu0 0
    %76 = vmatpush2.bf16.msra.mxu0 0
    %77 = vmatprep.mubr.bf16.mxu0 0
    %78 = vmatmul.mubr.bf16.gmra.mxu0 %v40
    %v79 = vpop.f32.mrf.mxu0
    %v80 = vadd.f32 %v36, %v79
    %v81 = vpop.f32.mrf.mxu0
    %v82 = vpop.f32.mrf.mxu0
    %v83 = vadd.f32 %v36, %v82
    %v84 = vpop.f32.mrf.mxu0
    %85 = vmatprep.mubr.bf16.mxu0 0
    %86 = vmatmul.mubr.bf16.gmra.mxu0 %v43
    %v87 = vpop.f32.mrf.mxu0
    %v88 = vadd.f32 %v36, %v87
    %v89 = vpop.f32.mrf.mxu0
    %v90 = vpop.f32.mrf.mxu0
    %v91 = vadd.f32 %v36, %v90
    %v92 = vpop.f32.mrf.mxu0
    %93 = vdwg.mxu0
    %vm94 = vcmask 261120
    %95 = vst.msk [vmem:[#allocation2] sm:$0xff] %vm94, %v80
    %96 = vst.msk [vmem:[#allocation2 + $0x8] sm:$0xff] %vm94, %v83
    %97 = vst.msk [vmem:[#allocation2 + $0x10] sm:$0xff] %vm94, %v88
    %98 = vst.msk [vmem:[#allocation2 + $0x18] sm:$0xff] %vm94, %v91
    // Predicated region
    $region14: #{tpu_custom_call.1} parent=1 // pred_check
      _
    $region15: #{tpu_custom_call.1} parent=1 // pred_check_branch
      %100 = sbr.rel (0) target = $region17
    $region16: #{tpu_custom_call.1} parent=1 // pred_region
      %s102 = ssub.s32 512, 512
      %103 = vsyncadd [#allocation3], %s102
      %s104 = sshll.u32 [#allocation2], 4
      %s105 = int_to_ptr.vmem [resolvable:$true] %s104
      %110 = dma.vmem_to_hbm [thread:$0]  %s105, 512, %s3, [#allocation3], 128, 128, 8
    $region17: #{tpu_custom_call.1} parent=1 // pred_fallthru
      _
    // Predicated region
    $region18: #{tpu_custom_call.1} parent=1 // pred_check
      _
    $region19: #{tpu_custom_call.1} parent=1 // pred_check_branch
      %112 = sbr.rel (0) target = $region21
    $region20: #{tpu_custom_call.1} parent=1 // pred_region
      %113 = dma.done [#allocation3], 512
    $region21: #{tpu_custom_call.1} parent=1 // pred_fallthru
      _
    %114 = vsyncpa [#allocation3], 1

</llo_original>
